<compile_context>
chip_gen: v6e
topology: v6e:2x2x1
jax: 0.10.0
libtpu: 0.0.40
codegen_flags: <defaults>
</compile_context>

<pallas_src>
import jax
import jax.numpy as jnp
from jax.experimental import pallas as pl
from jax.experimental.pallas import tpu as pltpu

_TILE_TARGET_BYTES = 4 * 1024 * 1024   # ~4 MiB/tile: ~86%+ of HBM roofline class
_VMEM_LIMIT_BYTES = 48 * 1024 * 1024   # v7x-safe (64 MiB physical per TensorCore)
_WIDE_LANE_CHOICES = (4096, 2048, 1024, 512, 256, 128)


def _copy_kernel(x_ref, o_ref):
    # Lane-dense pass-through of one (tile_rows, width) block: full, unmasked
    # vector stores; the BlockSpec machinery double-buffers the HBM DMAs.
    o_ref[...] = x_ref[...]


def _cdiv(a, b):
    return -(-a // b)


def _round_up(x, m):
    return ((x + m - 1) // m) * m


def _lane_dense_view(obs):
    """Zero-copy 2D view of `obs` with the widest lane-dense last dim possible."""
    n = obs.size
    for w in _WIDE_LANE_CHOICES:
        if n % w == 0:
            return obs.reshape(n // w, w)
    # Element count not a multiple of 128: keep the native last dim.  Block
    # dims equal to the full array dims are always legal (no pad, no slice).
    if obs.ndim >= 2:
        return obs.reshape(-1, obs.shape[-1])
    return obs.reshape(1, -1) if obs.ndim == 1 else obs.reshape(1, 1)


def _choose_tile_rows(rows, width, itemsize):
    """Rows-per-tile (sublane-aligned, ~4 MiB) and grid length, v7x-balanced."""
    sub = max(8, 32 // max(itemsize, 1))          # f32: 8, bf16: 16, int8: 32
    row_bytes = max(width * itemsize, 1)
    tb = max(sub, (_TILE_TARGET_BYTES // row_bytes) // sub * sub)
    if tb >= rows:
        return rows, 1                            # single full block (always legal)
    steps = _cdiv(rows, tb)
    # Balance for v7x's two TensorCores: prefer an even number of near-equal
    # steps (neutral on single-TC v5e/v6e).
    if steps % 2 == 1:
        tb_bal = _round_up(_cdiv(rows, steps + 1), sub)
        if sub <= tb_bal < rows:
            tb = tb_bal
            steps = _cdiv(rows, tb)
    return tb, steps


def _pallas_identity_copy(obs):
    """Materialized identity copy at the 1-read + 1-write HBM minimum."""
    if obs.size == 0:
        return obs
    orig_shape = obs.shape
    x2d = _lane_dense_view(obs)
    rows, width = x2d.shape
    itemsize = x2d.dtype.itemsize
    tb, steps = _choose_tile_rows(rows, width, itemsize)

    out2d = pl.pallas_call(
        _copy_kernel,
        out_shape=jax.ShapeDtypeStruct((rows, width), x2d.dtype),
        grid_spec=pltpu.PrefetchScalarGridSpec(
            num_scalar_prefetch=0,
            grid=(steps,),
            in_specs=[pl.BlockSpec((tb, width), lambda i: (i, 0))],
            out_specs=pl.BlockSpec((tb, width), lambda i: (i, 0)),
        ),
        compiler_params=pltpu.CompilerParams(
            dimension_semantics=("parallel",),   # shard grid across v7x's 2 TCs
            vmem_limit_bytes=_VMEM_LIMIT_BYTES,
        ),
        cost_estimate=pl.CostEstimate(
            flops=0,
            transcendentals=0,
            bytes_accessed=2 * obs.size * itemsize,
        ),
    )(x2d)

    # Contiguous reshape back to the caller's shape (no extra HBM pass).
    return out2d.reshape(orig_shape)


def identity_encoder_forward(obs, detach=False, use_pallas=False):
    """Pallas/JAX implementation of IdentityEncoder.forward.

    Default (use_pallas=False): return obs unchanged — the identity has zero
    compute, so the fastest kernel is no kernel.
    use_pallas=True: force a fresh, materialized copy through the
    bandwidth-optimal Pallas copy kernel.
    """
    out = _pallas_identity_copy(obs) if use_pallas else obs
    if detach:
        out = jax.lax.stop_gradient(out)   # parity with torch .detach()
    return out


class IdentityEncoderPallas:
    """Mirror of the PyTorch IdentityEncoder module (no parameters)."""

    def __init__(self, obs_shape, feature_dim, num_layers, num_filters, *args):
        assert len(obs_shape) == 1
        self.feature_dim = obs_shape[0]

    def __call__(self, obs, detach=False, use_pallas=False):
        return identity_encoder_forward(obs, detach=detach, use_pallas=use_pallas)

    def copy_conv_weights_from(self, source):
        pass  # no conv weights

    def log(self, L, step, log_freq):
        pass  # nothing to log


if __name__ == "__main__":
    key = jax.random.PRNGKey(0)
    k_small, k_large = jax.random.split(key)

    # DMControl-style proprioceptive observation: batch=2, obs_dim=24.
    batch, obs_dim = 2, 24
    obs = jax.random.normal(k_small, (batch, obs_dim), dtype=jnp.float32)

    encoder = IdentityEncoderPallas((obs_dim,), feature_dim=50,
                                    num_layers=4, num_filters=32)

    # 1) Fast path (recommended): identity with zero data movement.
    out_fast = jax.block_until_ready(encoder(obs))
    assert out_fast.shape == obs.shape and out_fast.dtype == obs.dtype
    assert bool(jnp.array_equal(out_fast, obs))

    # 2) Pallas copy path on the small obs: single full-shape block, no pad,
    #    no slice, no self-aliasing.
    out_small = jax.block_until_ready(encoder(obs, use_pallas=True))
    assert out_small.shape == obs.shape and out_small.dtype == obs.dtype
    assert bool(jnp.array_equal(out_small, obs))

    # 3) Pallas copy path on a larger tensor: exercises the wide lane-dense
    #    view (576 x 4096), ~2.25 MiB sublane-aligned tiles, and the even,
    #    perfectly balanced 4-step grid for v7x's two TensorCores.
    big = jax.random.normal(k_large, (2304, 1024), dtype=jnp.float32)
    out_big = jax.block_until_ready(identity_encoder_forward(big, use_pallas=True))
    assert out_big.shape == big.shape and out_big.dtype == big.dtype
    assert bool(jnp.array_equal(out_big, big))

    # 4) detach parity check (forward value unchanged).
    out_det = jax.block_until_ready(encoder(obs, detach=True))
    assert bool(jnp.array_equal(out_det, obs))

    print("KERNEL_OK")
</pallas_src>

<mosaic_0001>
module attributes {stable_mosaic.version = 11 : i64} {
  func.func @_copy_kernel(%arg0: i32, %arg1: memref<2x24xf32, #tpu.memory_space<vmem>>, %arg2: memref<2x24xf32, #tpu.memory_space<vmem>>) attributes {dimension_semantics = [#tpu.dimension_semantics<parallel>], iteration_bounds = array<i64: 1>, scalar_prefetch = 0 : i64, scratch_operands = 0 : i64, tpu.core_type = #tpu.core_type<tc>, window_params = [{transform_indices = @transform_0, window_bounds = array<i64: 2, 24>}, {transform_indices = @transform_1, window_bounds = array<i64: 2, 24>}]} {
    %c0 = arith.constant 0 : index
    %c0_0 = arith.constant 0 : index
    %0 = vector.load %arg1[%c0, %c0_0] : memref<2x24xf32, #tpu.memory_space<vmem>>, vector<2x24xf32>
    %c0_1 = arith.constant 0 : index
    %c0_2 = arith.constant 0 : index
    %1 = vector.load %arg2[%c0_1, %c0_2] : memref<2x24xf32, #tpu.memory_space<vmem>>, vector<2x24xf32>
    tpu.vector_store %arg2[%c0_1, %c0_2], %0 {strides = array<i32>} : memref<2x24xf32, #tpu.memory_space<vmem>>, vector<2x24xf32>,
    return
  }
  func.func @transform_0(%arg0: i32) -> (i32, i32) {
    %c0_i32 = arith.constant 0 : i32
    %c0_i32_0 = arith.constant 0 : i32
    return %arg0, %c0_i32 : i32, i32
  }
  func.func @transform_1(%arg0: i32) -> (i32, i32) {
    %c0_i32 = arith.constant 0 : i32
    %c0_i32_0 = arith.constant 0 : i32
    return %arg0, %c0_i32 : i32, i32
  }
}

</mosaic_0001>

<llo_original>
// kernel: tpu_custom_call.1
$region0: #{tpu_custom_call.1}
  #allocation0 [shape = 'u32[]', space=smem, size = 0x4, offset = 0x4, fixed_abs, tag = 'smem constant byte address 0x4 - core index']
  #allocation1 [shape = 'u32[144,128]{1,0:T(1,128)}', space=vmem, size = 0x12000, scoped, tag = 'internal scratch']
  %s0 = inlined_call_operand.hbm [shape: f32[2,24], index: 0, kind: input, shape index: {}]
  %s1 = inlined_call_operand.hbm [shape: f32[2,24], index: 1, kind: output, shape index: {}]
  %s2 = sld [smem:[#allocation0]]
  $region18: #{tpu_custom_call.1} parent=0
    _
  %s4 = ssub.s32 1, %s2
  %s5 = scalar_select 0, %s4, %s2
  $region1: #{tpu_custom_call.1} parent=0
    #allocation2 [shape = 'u8[1024]{0}', space=vmem, size = 0x400, scoped, tag = 'input window, operand 0, single buffered']
    #allocation3 [shape = 's32[1]{0}', space=sflag, size = 0x4, scoped, tag = 'scoped memory for tpu_custom_call.1']
    #allocation4 [shape = 's32[1]{0}', space=sflag, size = 0x4, scoped, tag = 'scoped memory for tpu_custom_call.1']
    #allocation5 [shape = 'u8[1024]{0}', space=vmem, size = 0x400, scoped, tag = 'output window, operand 0, single buffered']
    %6 = vsyncpa [#allocation3], 0
    %7 = vsyncpa [#allocation4], 0
    // Predicated region
    $region2: #{tpu_custom_call.1} parent=1 // pred_check
      _
    $region3: #{tpu_custom_call.1} parent=1 // pred_check_branch
      %9 = sbr.rel (0) target = $region5
    $region4: #{tpu_custom_call.1} parent=1 // pred_region
      %s11 = ssub.s32 32, 32
      %12 = vsyncadd [#allocation3], %s11
      %s14 = sshll.u32 [#allocation2], 4
      %s15 = int_to_ptr.vmem [resolvable:$true] %s14
      %17 = dma.hbm_to_vmem [thread:$0]  %s0, 32, %s15, [#allocation3]
    $region5: #{tpu_custom_call.1} parent=1 // pred_fallthru
      _
    // Predicated region
    $region6: #{tpu_custom_call.1} parent=1 // pred_check
      _
    $region7: #{tpu_custom_call.1} parent=1 // pred_check_branch
      %19 = sbr.rel (0) target = $region9
    $region8: #{tpu_custom_call.1} parent=1 // pred_region
      %20 = dma.done [#allocation3], 32
    $region9: #{tpu_custom_call.1} parent=1 // pred_fallthru
      _
    %v21 = vld [vmem:[#allocation2] sm:$0x3]
    %vm22 = vcmask 189440
    %23 = vst.msk [vmem:[#allocation5] sm:$0x3] %vm22, %v21
    // Predicated region
    $region10: #{tpu_custom_call.1} parent=1 // pred_check
      _
    $region11: #{tpu_custom_call.1} parent=1 // pred_check_branch
      %25 = sbr.rel (0) target = $region13
    $region12: #{tpu_custom_call.1} parent=1 // pred_region
      %s27 = ssub.s32 32, 32
      %28 = vsyncadd [#allocation4], %s27
      %s30 = sshll.u32 [#allocation5], 4
      %s31 = int_to_ptr.vmem [resolvable:$true] %s30
      %33 = dma.vmem_to_hbm [thread:$0]  %s31, 32, %s1, [#allocation4]
    $region13: #{tpu_custom_call.1} parent=1 // pred_fallthru
      _
    // Predicated region
    $region14: #{tpu_custom_call.1} parent=1 // pred_check
      _
    $region15: #{tpu_custom_call.1} parent=1 // pred_check_branch
      %35 = sbr.rel (0) target = $region17
    $region16: #{tpu_custom_call.1} parent=1 // pred_region
      %36 = dma.done [#allocation4], 32
    $region17: #{tpu_custom_call.1} parent=1 // pred_fallthru
      _
    %37 = vsyncpa [#allocation3], 1
    %38 = vsyncpa [#allocation4], 1

</llo_original>
